<compile_context>
chip_gen: v5e
topology: v5e:2x2
jax: 0.10.0
libtpu: 0.0.40
codegen_flags: <defaults>
</compile_context>

<pallas_src>
import functools

import jax
import jax.numpy as jnp
from jax.experimental import pallas as pl
from jax.experimental.pallas import tpu as pltpu

_LANE = 128      # TPU lane width (last-dim tiling unit)
_SUBLANE = 8     # f32 sublane tiling unit


def _rmsnorm_kernel(x_ref, w_ref, o_ref, *, inv_dim, eps):
    # x_ref: (TM, Dp), w_ref: (1, Dp) already f32, o_ref: (TM, Dp)
    x = x_ref[...].astype(jnp.float32)
    # Mean over the *true* dim; padded lanes are zero so a plain sum is exact.
    ms = jnp.sum(x * x, axis=-1, keepdims=True) * inv_dim
    inv = jax.lax.rsqrt(ms + eps)
    # Scale rows first, then one multiply by the resident weight per tile.
    o_ref[...] = ((x * inv) * w_ref[...]).astype(o_ref.dtype)


def _pick_block_rows(dim_p: int, itemsize: int) -> int:
    # Target ~16 MiB of double-buffered (input + output) blocks: big enough to
    # sit on the HBM roofline, small enough to fit v7x's 64 MiB VMEM (with
    # headroom for the f32 temporaries) as well as v5e/v6e.
    budget = 16 * 1024 * 1024
    per_row = 4 * itemsize * dim_p          # 2 input buffers + 2 output buffers
    tm = max(_SUBLANE, budget // max(per_row, 1))
    tm = min(tm, 1024)
    mult = _SUBLANE if itemsize >= 4 else 16  # bf16/fp16 pack 16 rows per vreg
    return max(mult, (tm // mult) * mult)


def rmsnorm(x: jax.Array, weight: jax.Array, eps: float = 1e-6,
            *, block_rows=None) -> jax.Array:
    """RMSNorm over the last axis. x: (..., dim), weight: (dim,)."""
    orig_shape = x.shape
    dim = orig_shape[-1]
    rows = 1
    for s in orig_shape[:-1]:
        rows *= s
    x2d = x.reshape(rows, dim)

    # Lane-dense last axis: pad dim up to a multiple of 128 only when needed.
    dim_p = ((dim + _LANE - 1) // _LANE) * _LANE
    if dim_p != dim:
        x2d = jnp.pad(x2d, ((0, 0), (0, dim_p - dim)))
        weight = jnp.pad(weight, (0, dim_p - dim))
    w2d = weight.astype(jnp.float32).reshape(1, dim_p)

    itemsize = jnp.dtype(x.dtype).itemsize
    tm = int(block_rows) if block_rows is not None else _pick_block_rows(dim_p, itemsize)
    if rows <= tm:
        tm = rows  # single full-extent block (always a legal block shape)
    grid = (pl.cdiv(rows, tm),)  # ragged tail handled by Pallas (clipped writes)

    kernel = functools.partial(_rmsnorm_kernel, inv_dim=1.0 / dim, eps=float(eps))

    cost = pl.CostEstimate(
        flops=4 * rows * dim,
        transcendentals=rows,
        bytes_accessed=2 * rows * dim * itemsize + dim * 4,
    )

    out = pl.pallas_call(
        kernel,
        out_shape=jax.ShapeDtypeStruct((rows, dim_p), x.dtype),
        grid_spec=pltpu.PrefetchScalarGridSpec(
            num_scalar_prefetch=0,
            grid=grid,
            in_specs=[
                pl.BlockSpec((tm, dim_p), lambda i: (i, 0)),
                pl.BlockSpec((1, dim_p), lambda i: (0, 0)),  # weight stays resident
            ],
            out_specs=pl.BlockSpec((tm, dim_p), lambda i: (i, 0)),
        ),
        compiler_params=pltpu.CompilerParams(
            dimension_semantics=("parallel",),
            vmem_limit_bytes=64 * 1024 * 1024,
        ),
        cost_estimate=cost,
    )(x2d, w2d)

    if dim_p != dim:
        out = out[:, :dim]
    return out.reshape(orig_shape)


if __name__ == "__main__":
    key = jax.random.PRNGKey(0)
    batch, seq, hidden = 2, 8, 32
    eps = 1e-6
    x = jax.random.normal(key, (batch, seq, hidden), dtype=jnp.float32)
    # deterministic parameter init matching nn.Parameter(torch.ones(dim))
    weight = jnp.ones((hidden,), dtype=jnp.float32)

    y = rmsnorm(x, weight, eps)
    y = jax.block_until_ready(y)

    # reference check (plain JAX, same semantics as the PyTorch forward)
    ref = weight * x * jax.lax.rsqrt(jnp.mean(x * x, axis=-1, keepdims=True) + eps)
    assert jnp.allclose(y, ref, atol=1e-5, rtol=1e-5), "mismatch vs reference"
    print("KERNEL_OK")
</pallas_src>

<mosaic_0001>
module attributes {stable_mosaic.version = 11 : i64} {
  func.func @_rmsnorm_kernel(%arg0: i32, %arg1: memref<16x128xf32, #tpu.memory_space<vmem>>, %arg2: memref<1x128xf32, #tpu.memory_space<vmem>>, %arg3: memref<16x128xf32, #tpu.memory_space<vmem>>) attributes {dimension_semantics = [#tpu.dimension_semantics<parallel>], iteration_bounds = array<i64: 1>, scalar_prefetch = 0 : i64, scratch_operands = 0 : i64, tpu.core_type = #tpu.core_type<tc>, window_params = [{transform_indices = @transform_0, window_bounds = array<i64: 16, 128>}, {pipeline_mode = #tpu.pipeline_mode<synchronous>, transform_indices = @transform_1, window_bounds = array<i64: 1, 128>}, {transform_indices = @transform_2, window_bounds = array<i64: 16, 128>}]} {
    %c0 = arith.constant 0 : index
    %c0_0 = arith.constant 0 : index
    %0 = vector.load %arg1[%c0, %c0_0] : memref<16x128xf32, #tpu.memory_space<vmem>>, vector<16x128xf32>
    %1 = arith.mulf %0, %0 : vector<16x128xf32>
    %cst = arith.constant dense<0.000000e+00> : vector<16xf32>
    %2 = vector.multi_reduction <add>, %1, %cst [1] : vector<16x128xf32> to vector<16xf32>
    %3 = vector.shape_cast %2 : vector<16xf32> to vector<16x1xf32>
    %cst_1 = arith.constant 3.125000e-02 : f32
    %4 = vector.broadcast %cst_1 : f32 to vector<16x1xf32>
    %5 = arith.mulf %3, %4 : vector<16x1xf32>
    %cst_2 = arith.constant 9.99999997E-7 : f32
    %6 = vector.broadcast %cst_2 : f32 to vector<16x1xf32>
    %7 = arith.addf %5, %6 : vector<16x1xf32>
    %8 = math.rsqrt %7 : vector<16x1xf32>
    %9 = vector.broadcast %8 : vector<16x1xf32> to vector<16x128xf32>
    %10 = arith.mulf %0, %9 : vector<16x128xf32>
    %c0_3 = arith.constant 0 : index
    %c0_4 = arith.constant 0 : index
    %11 = vector.load %arg2[%c0_3, %c0_4] : memref<1x128xf32, #tpu.memory_space<vmem>>, vector<1x128xf32>
    %12 = vector.broadcast %11 : vector<1x128xf32> to vector<16x128xf32>
    %13 = arith.mulf %10, %12 : vector<16x128xf32>
    %c0_5 = arith.constant 0 : index
    %c0_6 = arith.constant 0 : index
    %14 = vector.load %arg3[%c0_5, %c0_6] : memref<16x128xf32, #tpu.memory_space<vmem>>, vector<16x128xf32>
    tpu.vector_store %arg3[%c0_5, %c0_6], %13 {strides = array<i32>} : memref<16x128xf32, #tpu.memory_space<vmem>>, vector<16x128xf32>,
    return
  }
  func.func @transform_0(%arg0: i32) -> (i32, i32) {
    %c0_i32 = arith.constant 0 : i32
    %c0_i32_0 = arith.constant 0 : i32
    return %arg0, %c0_i32 : i32, i32
  }
  func.func @transform_1(%arg0: i32) -> (i32, i32) {
    %c0_i32 = arith.constant 0 : i32
    %c0_i32_0 = arith.constant 0 : i32
    %c0_i32_1 = arith.constant 0 : i32
    return %c0_i32, %c0_i32_0 : i32, i32
  }
  func.func @transform_2(%arg0: i32) -> (i32, i32) {
    %c0_i32 = arith.constant 0 : i32
    %c0_i32_0 = arith.constant 0 : i32
    return %arg0, %c0_i32 : i32, i32
  }
}

</mosaic_0001>

<llo_original>
// kernel: tpu_custom_call.1
$region0: #{tpu_custom_call.1}
  #allocation0 [shape = 'u32[]', space=smem, size = 0x4, offset = 0x4, fixed_abs, tag = 'smem constant byte address 0x4 - core index']
  #allocation1 [shape = 'u32[72,128]{1,0:T(1,128)}', space=vmem, size = 0x9000, scoped, tag = 'internal scratch']
  %s0 = inlined_call_operand.hbm [shape: f32[16,128], index: 0, kind: input, shape index: {}]
  %s1 = inlined_call_operand.hbm [shape: f32[1,128], index: 1, kind: input, shape index: {}]
  %s2 = inlined_call_operand.hbm [shape: f32[16,128], index: 2, kind: output, shape index: {}]
  %s3 = sld [smem:[#allocation0]]
  $region26: #{tpu_custom_call.1} parent=0
    _
  %s5 = ssub.s32 1, %s3
  %s6 = scalar_select 0, %s5, %s3
  $region1: #{tpu_custom_call.1} parent=0
    #allocation2 [shape = 'u8[8192]{0}', space=vmem, size = 0x2000, scoped, tag = 'input window, operand 0, single buffered']
    #allocation3 [shape = 's32[1]{0}', space=sflag, size = 0x4, scoped, tag = 'scoped memory for tpu_custom_call.1']
    #allocation4 [shape = 's32[1]{0}', space=sflag, size = 0x4, scoped, tag = 'scoped memory for tpu_custom_call.1']
    #allocation5 [shape = 'u8[512]{0}', space=vmem, size = 0x400, scoped, tag = 'input window, operand 1, single buffered']
    #allocation6 [shape = 's32[1]{0}', space=sflag, size = 0x4, scoped, tag = 'scoped memory for tpu_custom_call.1']
    #allocation7 [shape = 'u8[8192]{0}', space=vmem, size = 0x2000, scoped, tag = 'output window, operand 0, single buffered']
    %7 = vsyncpa [#allocation3], 0
    %8 = vsyncpa [#allocation6], 0
    %9 = vsyncpa [#allocation4], 0
    // Predicated region
    $region2: #{tpu_custom_call.1} parent=1 // pred_check
      _
    $region3: #{tpu_custom_call.1} parent=1 // pred_check_branch
      %11 = sbr.rel (0) target = $region5
    $region4: #{tpu_custom_call.1} parent=1 // pred_region
      %13 = vsyncadd [#allocation3], 0
      %s14 = sshll.u32 %s0, 4
      %s15 = int_to_ptr.hbm [resolvable:$true] %s14
      %s16 = sshll.u32 [#allocation2], 4
      %s17 = int_to_ptr.vmem [resolvable:$true] %s16
      %22 = dma.hbm_to_vmem [thread:$0]  %s15, 256, %s17, [#allocation3], 128, 128, 8
    $region5: #{tpu_custom_call.1} parent=1 // pred_fallthru
      _
    // Predicated region
    $region6: #{tpu_custom_call.1} parent=1 // pred_check
      _
    $region7: #{tpu_custom_call.1} parent=1 // pred_check_branch
      %24 = sbr.rel (0) target = $region9
    $region8: #{tpu_custom_call.1} parent=1 // pred_region
      %26 = vsyncadd [#allocation6], 0
      %s28 = sshll.u32 %s1, 4
      %s29 = int_to_ptr.hbm [resolvable:$true] %s28
      %s30 = sshll.u32 [#allocation5], 4
      %s31 = int_to_ptr.vmem [resolvable:$true] %s30
      %33 = dma.hbm_to_vmem [thread:$0]  %s29, 16, %s31, [#allocation6]
    $region9: #{tpu_custom_call.1} parent=1 // pred_fallthru
      _
    // Predicated region
    $region10: #{tpu_custom_call.1} parent=1 // pred_check
      _
    $region11: #{tpu_custom_call.1} parent=1 // pred_check_branch
      %35 = sbr.rel (0) target = $region13
    $region12: #{tpu_custom_call.1} parent=1 // pred_region
      %37 = dma.done [#allocation3], 256
    $region13: #{tpu_custom_call.1} parent=1 // pred_fallthru
      _
    // Predicated region
    $region14: #{tpu_custom_call.1} parent=1 // pred_check
      _
    $region15: #{tpu_custom_call.1} parent=1 // pred_check_branch
      %39 = sbr.rel (0) target = $region17
    $region16: #{tpu_custom_call.1} parent=1 // pred_region
      %41 = dma.done [#allocation6], 16
    $region17: #{tpu_custom_call.1} parent=1 // pred_fallthru
      _
    %v42 = vld [vmem:[#allocation2] sm:$0xff]
    %v43 = vld [vmem:[#allocation2 + $0x8] sm:$0xff]
    %v44 = vmul.f32 %v42, %v42
    %v45 = vmul.f32 %v43, %v43
    %46 = vadd.xlane.f32.xlu0 %v44
    %v47 = vpop.xlane.xlu0 %46
    %48 = vadd.xlane.f32.xlu0 %v45
    %v49 = vpop.xlane.xlu0 %48
    %v50 = vmul.f32 %v47, 0.03125
    %v51 = vmul.f32 %v49, 0.03125
    %v52 = vadd.f32 %v50, 1e-06
    %v53 = vadd.f32 %v51, 1e-06
    %v54 = vrsqrt.pop %v52
    %v55 = vmul.f32 %v54, %v52
    %v56 = vmul.f32 %v55, %v54
    %v57 = vmul.f32 0.5, %v56
    %v58 = vsub.f32 1.5, %v57
    %v59 = vmul.f32 %v54, %v58
    %vm60 = vweird.f32 %v52
    %vm61 = vweird.f32 %v54
    %vm62 = vmor %vm60, %vm61
    %v63 = vsel %vm62, %v54, %v59
    %v64 = vrsqrt.pop %v53
    %v65 = vmul.f32 %v64, %v53
    %v66 = vmul.f32 %v65, %v64
    %v67 = vmul.f32 0.5, %v66
    %v68 = vsub.f32 1.5, %v67
    %v69 = vmul.f32 %v64, %v68
    %vm70 = vweird.f32 %v53
    %vm71 = vweird.f32 %v64
    %vm72 = vmor %vm70, %vm71
    %v73 = vsel %vm72, %v64, %v69
    %v74 = vmul.f32 %v42, %v63
    %v75 = vmul.f32 %v43, %v73
    %v76 = vld [vmem:[#allocation5] sm:$0x1]
    %v78 = vperm.slane %v76, 0
    %v80 = vmul.f32 %v74, %v78
    %v81 = vmul.f32 %v75, %v78
    %82 = vst [vmem:[#allocation7] sm:$0xff] %v80
    %83 = vst [vmem:[#allocation7 + $0x8] sm:$0xff] %v81
    // Predicated region
    $region18: #{tpu_custom_call.1} parent=1 // pred_check
      _
    $region19: #{tpu_custom_call.1} parent=1 // pred_check_branch
      %85 = sbr.rel (0) target = $region21
    $region20: #{tpu_custom_call.1} parent=1 // pred_region
      %87 = vsyncadd [#allocation4], 0
      %s88 = sshll.u32 [#allocation7], 4
      %s89 = int_to_ptr.vmem [resolvable:$true] %s88
      %s90 = sshll.u32 %s2, 4
      %s91 = int_to_ptr.hbm [resolvable:$true] %s90
      %96 = dma.vmem_to_hbm [thread:$0]  %s89, 256, %s91, [#allocation4], 128, 128, 8
    $region21: #{tpu_custom_call.1} parent=1 // pred_fallthru
      _
    // Predicated region
    $region22: #{tpu_custom_call.1} parent=1 // pred_check
      _
    $region23: #{tpu_custom_call.1} parent=1 // pred_check_branch
      %98 = sbr.rel (0) target = $region25
    $region24: #{tpu_custom_call.1} parent=1 // pred_region
      %100 = dma.done [#allocation4], 256
    $region25: #{tpu_custom_call.1} parent=1 // pred_fallthru
      _
    %101 = vsyncpa [#allocation3], 1
    %102 = vsyncpa [#allocation6], 1
    %103 = vsyncpa [#allocation4], 1

</llo_original>
